<compile_context>
chip_gen: v7x
topology: tpu7x:2x2x1
jax: 0.10.0
libtpu: 0.0.40
codegen_flags: <defaults>
</compile_context>

<pallas_src>
import functools

import jax
import jax.numpy as jnp
from jax import lax
from jax.experimental import pallas as pl
from jax.experimental.pallas import tpu as pltpu


# ----------------------------- Pallas kernel -------------------------------
def gloss_encoder_kernel(ids_ref, m_ref, tbl_ref, b_ref, out_ref, ctx_acc, *,
                         chunk):
    s = pl.program_id(1)                 # sequence (reduction) axis
    bt, st = ids_ref.shape               # token-id / mask tile
    v_pad, h = tbl_ref.shape             # fused (vocab_pad, H) table
    n_chunks = st // chunk               # static strip-mine factor

    @pl.when(s == 0)
    def _init():
        ctx_acc[...] = jnp.zeros_like(ctx_acc)

    tbl = tbl_ref[...]                   # (v_pad, h) bf16, VMEM-resident
    bias = b_ref[...]                    # (1, h) f32
    # hoisted out of the chunk loop (broadcast_in_dim is not CSE'd)
    iota_v = lax.broadcasted_iota(jnp.int32, (bt, chunk, v_pad), 2)

    for c in range(n_chunks):            # static Python strip-mine over chunks
        ids = ids_ref[:, pl.ds(c * chunk, chunk)]     # (bt, chunk) int32
        m = m_ref[:, pl.ds(c * chunk, chunk)]         # (bt, chunk) f32 (pre-normalized)

        # --- in-kernel embedding gather + encoder layer: one MXU matmul ------
        onehot = (ids[:, :, None] == iota_v).astype(jnp.bfloat16)   # (bt,chunk,v_pad)
        hc = jnp.dot(onehot.reshape(bt * chunk, v_pad), tbl,
                     preferred_element_type=jnp.float32)            # (bt*chunk, h) f32
        # TODO(synk): bf16 tanh on v6e/v7x EUP would halve EUP cycles.
        hc = jnp.tanh(hc + bias)
        hc3 = hc.reshape(bt, chunk, h)

        # --- masked-mean pooling on VPU/XLU (mask already divided by row sum)
        ctx_acc[...] += jnp.sum(hc3 * m[:, :, None], axis=1)        # (bt, h)

        # --- [CLS] token (global position 0) lives in chunk 0 of s-tile 0 ----
        if c == 0:
            @pl.when(s == 0)
            def _cls():
                out_ref[...] = hc3[:, 0, :].astype(out_ref.dtype)

    # --- finalize: out = cls + masked mean context ----------------------------
    @pl.when(s == pl.num_programs(1) - 1)
    def _finalize():
        out_ref[...] += ctx_acc[...]


# ------------------------------- wrapper ------------------------------------
def _pick_tile(dim, target, mult):
    """Largest divisor of `dim` <= target that is a multiple of `mult`
    (or the full dim, which is always a legal block)."""
    t = min(dim, target)
    while t > 0:
        if dim % t == 0 and (t % mult == 0 or t == dim):
            return t
        t -= 1
    return dim


def _vmem_limit_bytes():
    """Generation-aware VMEM budget: ~40 MiB on v7x (64 MiB/TC),
    ~104 MiB on v5e/v6e (128 MiB)."""
    try:
        cap = int(pltpu.get_tpu_info().vmem_capacity_bytes)
    except Exception:
        cap = 64 * 1024 * 1024           # conservative fallback (v7x per-TC)
    limit = min(cap - 24 * 1024 * 1024, 104 * 1024 * 1024)
    return max(limit, 32 * 1024 * 1024)


def gloss_encoder_forward(input_ids, attn_mask, params, *, b_tile=8, s_tile=512):
    """input_ids, attn_mask: (B, S) int32. Returns (B, H) f32 [CLS] embedding."""
    emb = params["embedding"]            # (V, H_in) f32
    w_enc = params["w_enc"]              # (H_in, H) f32
    b_enc = params["b_enc"]              # (1, H) f32

    B, S = input_ids.shape
    V, H_in = emb.shape
    H = w_enc.shape[1]

    # Fold the per-token linear into the lookup table: T = emb @ W (exact).
    # Pad the vocab dim to a multiple of 128 for lane-dense MXU contraction.
    tbl = jnp.dot(emb, w_enc, preferred_element_type=jnp.float32,
                  precision=lax.Precision.HIGHEST)                    # (V, H) f32
    v_pad = ((V + 127) // 128) * 128
    if v_pad != V:
        tbl = jnp.pad(tbl, ((0, v_pad - V), (0, 0)))
    tbl = tbl.astype(jnp.bfloat16)

    # Pre-normalize the mask so masked_mean == sum_s m_norm[b,s] * h[b,s,:]
    m = attn_mask.astype(jnp.float32)
    m = m / jnp.maximum(jnp.sum(m, axis=1, keepdims=True), 1.0)

    ids = input_ids.astype(jnp.int32)
    bias = b_enc.astype(jnp.float32).reshape(1, H)

    # Tiles: bt multiple of 8 (or full B), st multiple of 128 (or full S).
    b_target = b_tile
    if B >= 16:                          # keep >=2 B-axis steps (v7x megacore)
        b_target = min(b_target, B // 2)
    bt = _pick_tile(B, b_target, 8)
    st = _pick_tile(S, s_tile, 128)
    grid = (B // bt, S // st)

    # Strip-mine factor for the in-body compute (bounds f32 intermediates).
    chunk = st
    for cand in (256, 128):
        if st > cand and st % cand == 0:
            chunk = cand
            break

    kern = functools.partial(gloss_encoder_kernel, chunk=chunk)

    out = pl.pallas_call(
        kern,
        out_shape=jax.ShapeDtypeStruct((B, H), jnp.float32),
        grid_spec=pltpu.PrefetchScalarGridSpec(
            num_scalar_prefetch=0,
            grid=grid,
            in_specs=[
                pl.BlockSpec((bt, st),     lambda i, s: (i, s)),   # token ids
                pl.BlockSpec((bt, st),     lambda i, s: (i, s)),   # normalized mask
                pl.BlockSpec((v_pad, H),   lambda i, s: (0, 0)),   # fused table (resident)
                pl.BlockSpec((1, H),       lambda i, s: (0, 0)),   # bias (resident)
            ],
            # same output block across the S axis -> resident accumulator
            out_specs=pl.BlockSpec((bt, H), lambda i, s: (i, 0)),
            scratch_shapes=[
                pltpu.VMEM((bt, H), jnp.float32),   # context numerator
            ],
        ),
        compiler_params=pltpu.CompilerParams(
            dimension_semantics=("parallel", "arbitrary"),
            vmem_limit_bytes=_vmem_limit_bytes(),
        ),
    )(ids, m, tbl, bias)
    return out


# ------------------------------ reference -----------------------------------
def reference_forward(input_ids, attn_mask, params):
    x = jnp.take(params["embedding"], input_ids, axis=0)             # (B, S, H_in)
    h = jnp.tanh(jnp.einsum('bsi,ij->bsj', x, params["w_enc"],
                            precision=lax.Precision.HIGHEST)
                 + params["b_enc"])                                   # (B, S, H)
    m = attn_mask.astype(jnp.float32)
    den = jnp.maximum(jnp.sum(m, axis=1, keepdims=True), 1.0)
    pooled = jnp.einsum('bs,bsh->bh', m, h) / den
    return h[:, 0, :] + pooled


# --------------------------------- main --------------------------------------
if __name__ == "__main__":
    B, S = 2, 8
    VOCAB, H_IN, H = 64, 32, 128

    key = jax.random.PRNGKey(0)
    k_emb, k_w, k_b, k_ids = jax.random.split(key, 4)

    params = {
        "embedding": jax.random.normal(k_emb, (VOCAB, H_IN), jnp.float32) * 0.1,
        "w_enc":     jax.random.normal(k_w, (H_IN, H), jnp.float32) * 0.1,
        "b_enc":     jax.random.normal(k_b, (1, H), jnp.float32) * 0.01,
    }

    input_ids = jax.random.randint(k_ids, (B, S), 0, VOCAB, dtype=jnp.int32)
    # attention mask: last two positions of each example are padding
    attn_mask = jnp.ones((B, S), jnp.int32).at[:, -2:].set(0)

    out = gloss_encoder_forward(input_ids, attn_mask, params)
    out = jax.block_until_ready(out)

    ref = reference_forward(input_ids, attn_mask, params)
    assert out.shape == (B, H)
    assert jnp.allclose(out, ref, atol=5e-3, rtol=5e-3), (
        float(jnp.max(jnp.abs(out - ref))))

    print("KERNEL_OK")
</pallas_src>

<mosaic_0001>
module attributes {stable_mosaic.version = 11 : i64} {
  func.func @gloss_encoder_kernel(%arg0: i32, %arg1: i32, %arg2: memref<2x8xi32, #tpu.memory_space<vmem>>, %arg3: memref<2x8xf32, #tpu.memory_space<vmem>>, %arg4: memref<128x128xbf16, #tpu.memory_space<vmem>>, %arg5: memref<1x128xf32, #tpu.memory_space<vmem>>, %arg6: memref<2x128xf32, #tpu.memory_space<vmem>>, %arg7: memref<2x128xf32, #tpu.memory_space<vmem>>) attributes {dimension_semantics = [#tpu.dimension_semantics<parallel>, #tpu.dimension_semantics<arbitrary>], iteration_bounds = array<i64: 1, 1>, scalar_prefetch = 0 : i64, scratch_operands = 1 : i64, tpu.core_type = #tpu.core_type<tc>, window_params = [{transform_indices = @transform_0, window_bounds = array<i64: 2, 8>}, {transform_indices = @transform_1, window_bounds = array<i64: 2, 8>}, {pipeline_mode = #tpu.pipeline_mode<synchronous>, transform_indices = @transform_2, window_bounds = array<i64: 128, 128>}, {pipeline_mode = #tpu.pipeline_mode<synchronous>, transform_indices = @transform_3, window_bounds = array<i64: 1, 128>}, {transform_indices = @transform_4, window_bounds = array<i64: 2, 128>}]} {
    %c0_i32 = arith.constant 0 : i32
    %0 = arith.cmpi eq, %arg1, %c0_i32 : i32
    %1 = arith.extui %0 : i1 to i32
    %c0_i32_0 = arith.constant 0 : i32
    %2 = arith.cmpi ne, %1, %c0_i32_0 : i32
    scf.if %2 {
      %cst_17 = arith.constant 0.000000e+00 : f32
      %33 = vector.broadcast %cst_17 : f32 to vector<2x128xf32>
      %c0_18 = arith.constant 0 : index
      %c0_19 = arith.constant 0 : index
      %34 = vector.load %arg7[%c0_18, %c0_19] : memref<2x128xf32, #tpu.memory_space<vmem>>, vector<2x128xf32>
      tpu.vector_store %arg7[%c0_18, %c0_19], %33 {strides = array<i32>} : memref<2x128xf32, #tpu.memory_space<vmem>>, vector<2x128xf32>,
    } else {
    }
    %c0 = arith.constant 0 : index
    %c0_1 = arith.constant 0 : index
    %3 = vector.load %arg4[%c0, %c0_1] : memref<128x128xbf16, #tpu.memory_space<vmem>>, vector<128x128xbf16>
    %c0_2 = arith.constant 0 : index
    %c0_3 = arith.constant 0 : index
    %4 = vector.load %arg5[%c0_2, %c0_3] : memref<1x128xf32, #tpu.memory_space<vmem>>, vector<1x128xf32>
    %5 = tpu.iota {dimensions = array<i32: 2>} : vector<2x8x128xi32>
    %c0_4 = arith.constant 0 : index
    %c0_5 = arith.constant 0 : index
    %6 = vector.load %arg2[%c0_4, %c0_5] : memref<2x8xi32, #tpu.memory_space<vmem>>, vector<2x8xi32>
    %c0_6 = arith.constant 0 : index
    %c0_7 = arith.constant 0 : index
    %7 = vector.load %arg3[%c0_6, %c0_7] : memref<2x8xf32, #tpu.memory_space<vmem>>, vector<2x8xf32>
    %8 = vector.shape_cast %6 : vector<2x8xi32> to vector<2x8x1xi32>
    %9 = vector.broadcast %8 : vector<2x8x1xi32> to vector<2x8x128xi32>
    %10 = arith.cmpi eq, %9, %5 : vector<2x8x128xi32>
    %11 = arith.extui %10 : vector<2x8x128xi1> to vector<2x8x128xi32>
    %12 = arith.sitofp %11 : vector<2x8x128xi32> to vector<2x8x128xf32>
    %13 = arith.truncf %12 : vector<2x8x128xf32> to vector<2x8x128xbf16>
    %14 = vector.shape_cast %13 : vector<2x8x128xbf16> to vector<16x128xbf16>
    %cst = arith.constant dense<0.000000e+00> : vector<16x128xf32>
    %15 = tpu.matmul %14, %3, %cst {dimension_numbers = #tpu.dot_dimension_numbers<[1], [0], [0], [1], [0, 0, 1, 1], [], []>} : vector<16x128xbf16>, vector<128x128xbf16>, vector<16x128xf32> -> vector<16x128xf32>
    %16 = vector.broadcast %4 : vector<1x128xf32> to vector<16x128xf32>
    %17 = arith.addf %15, %16 : vector<16x128xf32>
    %18 = math.tanh %17 : vector<16x128xf32>
    %19 = vector.shape_cast %18 : vector<16x128xf32> to vector<2x8x128xf32>
    %c0_8 = arith.constant 0 : index
    %c0_9 = arith.constant 0 : index
    %20 = vector.load %arg7[%c0_8, %c0_9] : memref<2x128xf32, #tpu.memory_space<vmem>>, vector<2x128xf32>
    %21 = vector.shape_cast %7 : vector<2x8xf32> to vector<2x8x1xf32>
    %22 = vector.broadcast %21 : vector<2x8x1xf32> to vector<2x8x128xf32>
    %23 = arith.mulf %19, %22 : vector<2x8x128xf32>
    %cst_10 = arith.constant dense<0.000000e+00> : vector<2x128xf32>
    %24 = vector.multi_reduction <add>, %23, %cst_10 [1] : vector<2x8x128xf32> to vector<2x128xf32>
    %25 = arith.addf %20, %24 : vector<2x128xf32>
    %c0_11 = arith.constant 0 : index
    %c0_12 = arith.constant 0 : index
    %26 = vector.load %arg7[%c0_11, %c0_12] : memref<2x128xf32, #tpu.memory_space<vmem>>, vector<2x128xf32>
    tpu.vector_store %arg7[%c0_11, %c0_12], %25 {strides = array<i32>} : memref<2x128xf32, #tpu.memory_space<vmem>>, vector<2x128xf32>,
    %c0_i32_13 = arith.constant 0 : i32
    %27 = arith.cmpi eq, %arg1, %c0_i32_13 : i32
    %28 = arith.extui %27 : i1 to i32
    %c0_i32_14 = arith.constant 0 : i32
    %29 = arith.cmpi ne, %28, %c0_i32_14 : i32
    scf.if %29 {
      %33 = vector.extract_strided_slice %19 {offsets = [0, 0, 0], sizes = [2, 1, 128], strides = [1, 1, 1]} : vector<2x8x128xf32> to vector<2x1x128xf32>
      %34 = vector.shape_cast %33 : vector<2x1x128xf32> to vector<2x128xf32>
      %c0_17 = arith.constant 0 : index
      %c0_18 = arith.constant 0 : index
      %35 = vector.load %arg6[%c0_17, %c0_18] : memref<2x128xf32, #tpu.memory_space<vmem>>, vector<2x128xf32>
      tpu.vector_store %arg6[%c0_17, %c0_18], %34 {strides = array<i32>} : memref<2x128xf32, #tpu.memory_space<vmem>>, vector<2x128xf32>,
    } else {
    }
    %c0_i32_15 = arith.constant 0 : i32
    %30 = arith.cmpi eq, %arg1, %c0_i32_15 : i32
    %31 = arith.extui %30 : i1 to i32
    %c0_i32_16 = arith.constant 0 : i32
    %32 = arith.cmpi ne, %31, %c0_i32_16 : i32
    scf.if %32 {
      %c0_17 = arith.constant 0 : index
      %c0_18 = arith.constant 0 : index
      %33 = vector.load %arg6[%c0_17, %c0_18] : memref<2x128xf32, #tpu.memory_space<vmem>>, vector<2x128xf32>
      %c0_19 = arith.constant 0 : index
      %c0_20 = arith.constant 0 : index
      %34 = vector.load %arg7[%c0_19, %c0_20] : memref<2x128xf32, #tpu.memory_space<vmem>>, vector<2x128xf32>
      %35 = arith.addf %33, %34 : vector<2x128xf32>
      %c0_21 = arith.constant 0 : index
      %c0_22 = arith.constant 0 : index
      %36 = vector.load %arg6[%c0_21, %c0_22] : memref<2x128xf32, #tpu.memory_space<vmem>>, vector<2x128xf32>
      tpu.vector_store %arg6[%c0_21, %c0_22], %35 {strides = array<i32>} : memref<2x128xf32, #tpu.memory_space<vmem>>, vector<2x128xf32>,
    } else {
    }
    return
  }
  func.func @transform_0(%arg0: i32, %arg1: i32) -> (i32, i32) {
    %c0_i32 = arith.constant 0 : i32
    return %arg0, %arg1 : i32, i32
  }
  func.func @transform_1(%arg0: i32, %arg1: i32) -> (i32, i32) {
    %c0_i32 = arith.constant 0 : i32
    return %arg0, %arg1 : i32, i32
  }
  func.func @transform_2(%arg0: i32, %arg1: i32) -> (i32, i32) {
    %c0_i32 = arith.constant 0 : i32
    %c0_i32_0 = arith.constant 0 : i32
    %c0_i32_1 = arith.constant 0 : i32
    return %c0_i32, %c0_i32_0 : i32, i32
  }
  func.func @transform_3(%arg0: i32, %arg1: i32) -> (i32, i32) {
    %c0_i32 = arith.constant 0 : i32
    %c0_i32_0 = arith.constant 0 : i32
    %c0_i32_1 = arith.constant 0 : i32
    return %c0_i32, %c0_i32_0 : i32, i32
  }
  func.func @transform_4(%arg0: i32, %arg1: i32) -> (i32, i32) {
    %c0_i32 = arith.constant 0 : i32
    %c0_i32_0 = arith.constant 0 : i32
    return %arg0, %c0_i32 : i32, i32
  }
}

</mosaic_0001>

<llo_original>
// kernel: tpu_custom_call.1
$region0: #{tpu_custom_call.1}
  #allocation0 [shape = 'u32[]', space=smem, size = 0x4, offset = 0x4, fixed_abs, tag = 'smem constant byte address 0x4 - core index']
  #allocation1 [shape = 'u32[144,128]{1,0:T(1,128)}', space=vmem, size = 0x12000, scoped, tag = 'internal scratch']
  #allocation2 [shape = 'f32[2,128]{1,0:T(2,128)}', space=vmem, size = 0x400, scoped, tag = 'scratch operand']
  %s0 = inlined_call_operand.hbm [shape: s32[2,8], index: 0, kind: input, shape index: {}]
  %s1 = inlined_call_operand.vmem [shape: f32[2,8], index: 1, kind: input, shape index: {}]
  %s2 = inlined_call_operand.hbm [shape: bf16[128,128], index: 2, kind: input, shape index: {}]
  %s3 = inlined_call_operand.vmem [shape: f32[1,128], index: 3, kind: input, shape index: {}]
  %s4 = inlined_call_operand.hbm [shape: f32[2,128], index: 4, kind: output, shape index: {}]
  %s5 = sld [smem:[#allocation0]]
  $region42: #{tpu_custom_call.1} parent=0
    _
  %s7 = ssub.s32 1, %s5
  %s8 = scalar_select 0, %s7, %s5
  $region1: #{tpu_custom_call.1} parent=0
    #allocation3 [shape = 'u8[1024]{0}', space=vmem, size = 0x400, scoped, tag = 'input window, operand 0, single buffered']
    #allocation4 [shape = 's32[1]{0}', space=sflag, size = 0x4, scoped, tag = 'scoped memory for tpu_custom_call.1']
    #allocation5 [shape = 's32[1]{0}', space=sflag, size = 0x4, scoped, tag = 'scoped memory for tpu_custom_call.1']
    #allocation6 [shape = 'u8[32768]{0}', space=vmem, size = 0x8000, scoped, tag = 'input window, operand 2, single buffered']
    #allocation7 [shape = 's32[1]{0}', space=sflag, size = 0x4, scoped, tag = 'scoped memory for tpu_custom_call.1']
    #allocation8 [shape = 'u8[1024]{0}', space=vmem, size = 0x400, scoped, tag = 'output window, operand 0, single buffered']
    %9 = vsyncpa [#allocation4], 0
    %10 = vsyncpa [#allocation7], 0
    %11 = vsyncpa [#allocation5], 0
    // Predicated region
    $region2: #{tpu_custom_call.1} parent=1 // pred_check
      _
    $region3: #{tpu_custom_call.1} parent=1 // pred_check_branch
      %13 = sbr.rel (0) target = $region5
    $region4: #{tpu_custom_call.1} parent=1 // pred_region
      %s15 = ssub.s32 32, 32
      %16 = vsyncadd [#allocation4], %s15
      %s18 = sshll.u32 [#allocation3], 4
      %s19 = int_to_ptr.vmem [resolvable:$true] %s18
      %21 = dma.hbm_to_vmem [thread:$0]  %s0, 32, %s19, [#allocation4]
    $region5: #{tpu_custom_call.1} parent=1 // pred_fallthru
      _
    // Predicated region
    $region6: #{tpu_custom_call.1} parent=1 // pred_check
      _
    $region7: #{tpu_custom_call.1} parent=1 // pred_check_branch
      %23 = sbr.rel (0) target = $region9
    $region8: #{tpu_custom_call.1} parent=1 // pred_region
      _
    $region9: #{tpu_custom_call.1} parent=1 // pred_fallthru
      _
    // Predicated region
    $region10: #{tpu_custom_call.1} parent=1 // pred_check
      _
    $region11: #{tpu_custom_call.1} parent=1 // pred_check_branch
      %25 = sbr.rel (0) target = $region13
    $region12: #{tpu_custom_call.1} parent=1 // pred_region
      %s27 = ssub.s32 1024, 1024
      %28 = vsyncadd [#allocation7], %s27
      %s29 = sshll.u32 [#allocation6], 4
      %s30 = int_to_ptr.vmem [resolvable:$true] %s29
      %35 = dma.hbm_to_vmem [thread:$0]  %s2, 1024, %s30, [#allocation7], 64, 64, 4
    $region13: #{tpu_custom_call.1} parent=1 // pred_fallthru
      _
    // Predicated region
    $region14: #{tpu_custom_call.1} parent=1 // pred_check
      _
    $region15: #{tpu_custom_call.1} parent=1 // pred_check_branch
      %37 = sbr.rel (0) target = $region17
    $region16: #{tpu_custom_call.1} parent=1 // pred_region
      _
    $region17: #{tpu_custom_call.1} parent=1 // pred_fallthru
      _
    // Predicated region
    $region18: #{tpu_custom_call.1} parent=1 // pred_check
      _
    $region19: #{tpu_custom_call.1} parent=1 // pred_check_branch
      %39 = sbr.rel (0) target = $region21
    $region20: #{tpu_custom_call.1} parent=1 // pred_region
      %40 = dma.done [#allocation4], 32
    $region21: #{tpu_custom_call.1} parent=1 // pred_fallthru
      _
    // Predicated region
    $region22: #{tpu_custom_call.1} parent=1 // pred_check
      _
    $region23: #{tpu_custom_call.1} parent=1 // pred_check_branch
      %42 = sbr.rel (0) target = $region25
    $region24: #{tpu_custom_call.1} parent=1 // pred_region
      %43 = dma.done [#allocation7], 1024
    $region25: #{tpu_custom_call.1} parent=1 // pred_fallthru
      _
    %p45 = scmp.eq.s32.totalorder 0, 0
    // Predicated region
    $region26: #{tpu_custom_call.1} parent=1 // pred_check
      %p46 = pneg %p45
    $region27: #{tpu_custom_call.1} parent=1 // pred_check_branch
      %48 = sbr.rel (%p46) target = $region29
    $region28: #{tpu_custom_call.1} parent=1 // pred_region
      %49 = vst [vmem:[#allocation2] sm:$0x3] 0.0
    $region29: #{tpu_custom_call.1} parent=1 // pred_fallthru
      _
    %v50 = vld [vmem:[#allocation6] sm:$0xf]
    %v51 = vld [vmem:[#allocation6 + $0x4] sm:$0xf]
    %v52 = vld [vmem:[#allocation6 + $0x8] sm:$0xf]
    %v53 = vld [vmem:[#allocation6 + $0xc] sm:$0xf]
    %v54 = vld [vmem:[#allocation6 + $0x10] sm:$0xf]
    %v55 = vld [vmem:[#allocation6 + $0x14] sm:$0xf]
    %v56 = vld [vmem:[#allocation6 + $0x18] sm:$0xf]
    %v57 = vld [vmem:[#allocation6 + $0x1c] sm:$0xf]
    %v58 = vld [vmem:[#allocation6 + $0x20] sm:$0xf]
    %v59 = vld [vmem:[#allocation6 + $0x24] sm:$0xf]
    %v60 = vld [vmem:[#allocation6 + $0x28] sm:$0xf]
    %v61 = vld [vmem:[#allocation6 + $0x2c] sm:$0xf]
    %v62 = vld [vmem:[#allocation6 + $0x30] sm:$0xf]
    %v63 = vld [vmem:[#allocation6 + $0x34] sm:$0xf]
    %v64 = vld [vmem:[#allocation6 + $0x38] sm:$0xf]
    %v65 = vld [vmem:[#allocation6 + $0x3c] sm:$0xf]
    %v66 = vld [vmem:[%s3] sm:$0x1]
    %v67 = vlaneseq
    %v68 = vand.u32 %v67, 127
    %v69 = vld [vmem:[#allocation3] sm:$0x3]
    %v70 = vld [vmem:[%s1] sm:$0x3]
    %v71 = vlaneseq
    %v72 = vshrl.u32 %v71, 7
    %v73 = vsub.s32 0, %v72
    %v74 = vrot.slane %v69, %v73
    %76 = vbcast.lane.b32.xlu0 %v74, 256
    %v77 = vpop.permute.xlu0 %76
    %v78 = vlaneseq
    %v79 = vshrl.u32 %v78, 7
    %v80 = vsub.s32 1, %v79
    %v81 = vrot.slane %v69, %v80
    %83 = vbcast.lane.b32.xlu0 %v81, 256
    %v84 = vpop.permute.xlu0 %83
    %vm85 = vcmp.eq.s32.totalorder %v77, %v68
    %vm86 = vcmp.eq.s32.totalorder %v84, %v68
    %v87 = vsel %vm85, 1, 0
    %v88 = vsel %vm86, 1, 0
    %v89 = vcvt.s32.f32 %v87
    %v90 = vcvt.s32.f32 %v88
    %v91 = vpack.c.bf16 %v89, %v89
    %v92 = vpack.c.bf16 %v90, %v90
    %v94 = vlaneseq
    %v95 = vshrl.u32 %v94, 7
    %v96 = vsub.s32 0, %v95
    %v97 = vrot.slane %v66, %v96
    %v101 = vunpack.c.l.b16 %v91
    %v102 = vunpack.c.l.b16 %v92
    %v103 = vpack.c.b16 %v102, %v101
    %v121 = vunpack.c.l.b16 %v50
    %v122 = vunpack.c.l.b16 %v51
    %v123 = vunpack.c.l.b16 %v52
    %v124 = vunpack.c.l.b16 %v53
    %v125 = vunpack.c.l.b16 %v54
    %v126 = vunpack.c.l.b16 %v55
    %v127 = vunpack.c.l.b16 %v56
    %v128 = vunpack.c.l.b16 %v57
    %v129 = vunpack.c.l.b16 %v58
    %v130 = vunpack.c.l.b16 %v59
    %v131 = vunpack.c.l.b16 %v60
    %v132 = vunpack.c.l.b16 %v61
    %v133 = vunpack.c.l.b16 %v62
    %v134 = vunpack.c.l.b16 %v63
    %v135 = vunpack.c.l.b16 %v64
    %v136 = vunpack.c.l.b16 %v65
    %v137 = vpack.c.b16 %v122, %v121
    %v138 = vpack.c.b16 %v124, %v123
    %v139 = vpack.c.b16 %v126, %v125
    %v140 = vpack.c.b16 %v128, %v127
    %v141 = vpack.c.b16 %v130, %v129
    %v142 = vpack.c.b16 %v132, %v131
    %v143 = vpack.c.b16 %v134, %v133
    %v144 = vpack.c.b16 %v136, %v135
    %153 = vmatprep.subr.bf16.mxu0 0
    %154 = vmatpush1.bf16.msra.mxu0 %v137
    %155 = vmatprep.subr.bf16.mxu0 0
    %156 = vmatpush1.bf16.msra.mxu0 %v138
    %157 = vmatprep.subr.bf16.mxu0 0
    %158 = vmatpush1.bf16.msra.mxu0 %v139
    %159 = vmatprep.subr.bf16.mxu0 0
    %160 = vmatpush1.bf16.msra.mxu0 %v140
    %161 = vmatprep.subr.bf16.mxu0 0
    %162 = vmatpush1.bf16.msra.mxu0 %v141
    %163 = vmatprep.subr.bf16.mxu0 0
    %164 = vmatpush1.bf16.msra.mxu0 %v142
    %165 = vmatprep.subr.bf16.mxu0 0
    %166 = vmatpush1.bf16.msra.mxu0 %v143
    %167 = vmatprep.subr.bf16.mxu0 0
    %168 = vmatpush1.bf16.msra.mxu0 %v144
    %169 = vmatprep.subr.bf16.mxu0 0
    %170 = vmatpush1.bf16.msra.mxu0 0
    %171 = vmatprep.subr.bf16.mxu0 0
    %172 = vmatpush1.bf16.msra.mxu0 0
    %173 = vmatprep.subr.bf16.mxu0 0
    %174 = vmatpush1.bf16.msra.mxu0 0
    %175 = vmatprep.subr.bf16.mxu0 0
    %176 = vmatpush1.bf16.msra.mxu0 0
    %177 = vmatprep.subr.bf16.mxu0 0
    %178 = vmatpush1.bf16.msra.mxu0 0
    %179 = vmatprep.subr.bf16.mxu0 0
    %180 = vmatpush1.bf16.msra.mxu0 0
    %181 = vmatprep.subr.bf16.mxu0 0
    %182 = vmatpush1.bf16.msra.mxu0 0
    %183 = vmatprep.subr.bf16.mxu0 0
    %184 = vmatpush1.bf16.msra.mxu0 0
    %185 = vmatprep.mubr.bf16.mxu0 0
    %186 = vmatmul.mubr.bf16.gmra.mrb[0].mxu0 %v103
    %v187 = vpop.f32.mrb[0].mxu0
    %v188 = vadd.f32 %v97, %v187
    %v189 = vpop.f32.mrb[0].mxu0
    %v190 = vpop.f32.mrb[0].mxu0
    %v191 = vadd.f32 %v97, %v190
    %v192 = vpop.f32.mrb[0].mxu0
    %193 = vdwg.mxu0
    %v194 = vtanh.pop %v188
    %v195 = vtanh.pop %v191
    %v196 = vld [vmem:[#allocation2] sm:$0x3]
    %v197 = vlaneseq
    %v198 = vshrl.u32 %v197, 7
    %v199 = vsub.s32 0, %v198
    %v200 = vrot.slane %v70, %v199
    %202 = vbcast.lane.b32.xlu0 %v200, 256
    %v203 = vpop.permute.xlu0 %202
    %v204 = vlaneseq
    %v205 = vshrl.u32 %v204, 7
    %v206 = vsub.s32 1, %v205
    %v207 = vrot.slane %v70, %v206
    %209 = vbcast.lane.b32.xlu0 %v207, 256
    %v210 = vpop.permute.xlu0 %209
    %v211 = vmul.f32 %v194, %v203
    %v212 = vmul.f32 %v195, %v210
    %v213 = vrot.slane %v211, 4
    %v214 = vadd.f32 %v211, %v213
    %v215 = vrot.slane %v214, 2
    %v216 = vadd.f32 %v214, %v215
    %v217 = vrot.slane %v216, 1
    %v218 = vadd.f32 %v216, %v217
    %v219 = vrot.slane %v212, 4
    %v220 = vadd.f32 %v212, %v219
    %v221 = vrot.slane %v220, 2
    %v222 = vadd.f32 %v220, %v221
    %v223 = vrot.slane %v222, 1
    %v224 = vadd.f32 %v222, %v223
    %vm227 = vcmask 1041409
    %v228 = vsel %vm227, %v224, %v218
    %v230 = vadd.f32 %v196, %v228
    %231 = vst [vmem:[#allocation2] sm:$0x3] %v230
    // Predicated region
    $region30: #{tpu_custom_call.1} parent=1 // pred_check
      %p232 = pneg %p45
    $region31: #{tpu_custom_call.1} parent=1 // pred_check_branch
      %234 = sbr.rel (%p232) target = $region33
    $region32: #{tpu_custom_call.1} parent=1 // pred_region
      %v237 = vrot.slane %v195, 7
      %v238 = vsel %vm227, %v237, %v194
      %240 = vst [vmem:[#allocation8] sm:$0x3] %v238
      %v241 = vld [vmem:[#allocation8] sm:$0x3]
      %v242 = vld [vmem:[#allocation2] sm:$0x3]
      %v243 = vadd.f32 %v241, %v242
      %244 = vst [vmem:[#allocation8] sm:$0x3] %v243
    $region33: #{tpu_custom_call.1} parent=1 // pred_fallthru
      _
    // Predicated region
    $region34: #{tpu_custom_call.1} parent=1 // pred_check
      _
    $region35: #{tpu_custom_call.1} parent=1 // pred_check_branch
      %246 = sbr.rel (0) target = $region37
    $region36: #{tpu_custom_call.1} parent=1 // pred_region
      %s248 = ssub.s32 32, 32
      %249 = vsyncadd [#allocation5], %s248
      %s251 = sshll.u32 [#allocation8], 4
      %s252 = int_to_ptr.vmem [resolvable:$true] %s251
      %254 = dma.vmem_to_hbm [thread:$0]  %s252, 32, %s4, [#allocation5]
    $region37: #{tpu_custom_call.1} parent=1 // pred_fallthru
      _
    // Predicated region
    $region38: #{tpu_custom_call.1} parent=1 // pred_check
      _
    $region39: #{tpu_custom_call.1} parent=1 // pred_check_branch
      %256 = sbr.rel (0) target = $region41
    $region40: #{tpu_custom_call.1} parent=1 // pred_region
      %257 = dma.done [#allocation5], 32
    $region41: #{tpu_custom_call.1} parent=1 // pred_fallthru
      _
    %258 = vsyncpa [#allocation4], 1
    %259 = vsyncpa [#allocation7], 1
    %260 = vsyncpa [#allocation5], 1

</llo_original>
